<compile_context>
chip_gen: v6e
topology: v6e:2x2x1
jax: 0.10.0
libtpu: 0.0.40
codegen_flags: <defaults>
</compile_context>

<pallas_src>
import functools

import jax
import jax.numpy as jnp
from jax.experimental import pallas as pl
from jax.experimental.pallas import tpu as pltpu


def _round_up(x, m):
    return (x + m - 1) // m * m


def _vmem_capacity_bytes():
    """Physical VMEM of the local chip; conservative 64 MiB fallback (v7x)."""
    try:
        info = pltpu.get_tpu_info()
        cap = getattr(info, "vmem_capacity_bytes", None)
        if cap:
            return int(cap)
    except Exception:
        pass
    return 64 << 20


def _num_tensorcores():
    """TensorCores per chip (v7x has 2). Conservative fallback: 1."""
    try:
        info = pltpu.get_tpu_info()
        for attr in ("num_cores", "tensorcore_count", "num_tensorcores",
                     "cores_per_chip"):
            v = getattr(info, attr, None)
            if v:
                return int(v)
    except Exception:
        pass
    try:
        kind = jax.devices()[0].device_kind.lower()
        if "v7" in kind:
            return 2
    except Exception:
        pass
    return 1


def _f1_partial_kernel(pred_ref, targ_ref, out_ref, tp_acc, p_acc, t_acc,
                       *, n_rows, batch_tile, steps_per_shard, last_block,
                       needs_mask):
    s = pl.program_id(0)   # shard axis (split across TCs on 2-core chips)
    i = pl.program_id(1)   # batch-reduction steps within the shard

    @pl.when(i == 0)
    def _():
        tp_acc[...] = jnp.zeros_like(tp_acc)
        p_acc[...] = jnp.zeros_like(p_acc)
        t_acc[...] = jnp.zeros_like(t_acc)

    c = tp_acc.shape[-1]
    fold = batch_tile // 8

    # Elementwise math in f32 (safe on v5e: no bf16 VPU/EUP).
    x = pred_ref[...].astype(jnp.float32)
    t = targ_ref[...].astype(jnp.float32)
    # sigmoid: exp lands on the EUP; exact divide keeps the 1e-4 tolerance.
    # TODO(synk): on v7x, pl.reciprocal(1 + e, approx=True) would free VALU
    # cycles — flip on only after re-validating against the tolerance.
    p = 1.0 / (1.0 + jnp.exp(-x))

    # predict = clamp(predict*(1-target), min=0.01) + predict*target
    # strength-reduced: p*(1-t) == p - p*t (reuses pt).
    pt = p * t
    p = jnp.maximum(p - pt, 0.01) + pt

    def accumulate(pv, tv):
        # Fold (tile, C) -> (tile//8, 8, C): per-step accumulation is pure VPU
        # elementwise adds into (8, C) scratch; the cross-sublane (XLU) reduce
        # happens once per shard in the finalize step.
        tp = pv * tv
        tp_acc[...] += jnp.sum(tp.reshape(fold, 8, c), axis=0)
        p_acc[...] += jnp.sum(pv.reshape(fold, 8, c), axis=0)
        t_acc[...] += jnp.sum(tv.reshape(fold, 8, c), axis=0)

    if needs_mask:
        # Mask only on the tail step(s); steady-state steps skip iota/where.
        b = s * steps_per_shard + i        # logical (unclamped) block index

        @pl.when(b < last_block)
        def _():
            accumulate(p, t)

        @pl.when(b >= last_block)
        def _():
            row0 = b * batch_tile
            rows = row0 + jax.lax.broadcasted_iota(
                jnp.int32, (batch_tile, 1), 0)
            valid = rows < n_rows              # (tile, 1) — broadcasts over C
            accumulate(jnp.where(valid, p, 0.0), jnp.where(valid, t, 0.0))
    else:
        accumulate(p, t)

    @pl.when(i == pl.num_programs(1) - 1)
    def _():
        # Per-shard (1, 3, C) partials, written row-by-row (no concatenate).
        out_ref[0, 0:1, :] = jnp.sum(tp_acc[...], axis=0, keepdims=True)
        out_ref[0, 1:2, :] = jnp.sum(p_acc[...], axis=0, keepdims=True)
        out_ref[0, 2:3, :] = jnp.sum(t_acc[...], axis=0, keepdims=True)


def f1_loss(predict, target, *, max_tile_rows=None, vmem_budget_bytes=None):
    """Pallas TPU implementation of F1Loss.forward(predict, target).

    predict/target: [N, C]. For best performance pass narrow dtypes straight
    from the producer (bf16 predict, int8/bool/bf16 binary target): the kernel
    is HBM-bound on v5e/v6e and upcasts to f32 internally, so halving input
    bytes is the biggest lever there. Do NOT cast right before this call
    (that would be a separate HBM round-trip XLA op).
    """
    assert predict.shape == target.shape and predict.ndim == 2
    n, c = predict.shape

    p_size = jnp.dtype(predict.dtype).itemsize
    t_size = jnp.dtype(target.dtype).itemsize
    # Sublane granularity per dtype (f32: 8 rows, bf16: 16, int8/bool: 32).
    gran = max(32 // p_size, 32 // t_size, 8)

    vmem_cap = _vmem_capacity_bytes()
    if vmem_budget_bytes is None:
        # Leave pipeline/compiler headroom: ~48 MiB usable on 64 MiB parts,
        # ~112 MiB usable on 128 MiB parts (v5e/v6e).
        vmem_budget_bytes = vmem_cap - (16 << 20)
    if max_tile_rows is None:
        max_tile_rows = 4096 if vmem_cap >= (96 << 20) else 1024

    # Per-row VMEM cost: double-buffered input tiles PLUS the in-kernel f32
    # temporaries (p, t, pt, tp and f32 cast copies of narrow inputs).
    bytes_per_row = 2 * c * (p_size + t_size) + 6 * c * 4
    cap_rows = max(gran, (vmem_budget_bytes // bytes_per_row) // gran * gran)
    tile = min(max_tile_rows, cap_rows, _round_up(n, gran))
    tile = max(gran, (tile // gran) * gran)

    total_steps = -(-n // tile)                      # cdiv
    # Shard the batch reduction across TensorCores only on 2-TC chips (v7x);
    # on single-TC parts a 2-way split just adds a wasted masked tail step.
    num_shards = 2 if (_num_tensorcores() >= 2 and total_steps >= 2) else 1
    steps_per_shard = -(-total_steps // num_shards)  # cdiv
    last_block = total_steps - 1
    needs_mask = (num_shards * steps_per_shard * tile) != n
    has_redundant = num_shards * steps_per_shard > total_steps

    def in_map(s, i):
        b = s * steps_per_shard + i
        if has_redundant:
            # Keep redundant tail steps in-bounds; their rows are fully masked.
            b = jnp.minimum(b, last_block)
        return (b, 0)

    kernel = functools.partial(
        _f1_partial_kernel,
        n_rows=n, batch_tile=tile, steps_per_shard=steps_per_shard,
        last_block=last_block, needs_mask=needs_mask)

    # vmem_limit derived from the real per-step footprint, capped below
    # physical VMEM (safe on v7x's 64 MiB as well as 128 MiB parts).
    need = tile * bytes_per_row + 4 * 8 * c * 4
    vmem_limit = int(min(vmem_cap - (2 << 20),
                         max(32 << 20, need + (16 << 20))))

    def _call(sem0, sem1):
        return pl.pallas_call(
            kernel,
            out_shape=jax.ShapeDtypeStruct((num_shards, 3, c), jnp.float32),
            grid_spec=pltpu.PrefetchScalarGridSpec(
                num_scalar_prefetch=0,
                grid=(num_shards, steps_per_shard),
                in_specs=[pl.BlockSpec((tile, c), in_map),
                          pl.BlockSpec((tile, c), in_map)],
                out_specs=pl.BlockSpec((1, 3, c), lambda s, i: (s, 0, 0)),
                scratch_shapes=[
                    pltpu.VMEM((8, c), jnp.float32),  # tp partial sums
                    pltpu.VMEM((8, c), jnp.float32),  # predict partial sums
                    pltpu.VMEM((8, c), jnp.float32),  # target partial sums
                ]),
            compiler_params=pltpu.CompilerParams(
                dimension_semantics=(sem0, sem1),
                vmem_limit_bytes=vmem_limit),
        )(predict, target)

    if num_shards > 1:
        core_parallel = getattr(pltpu, "CORE_PARALLEL", None)
        arbitrary = getattr(pltpu, "ARBITRARY", "arbitrary")
        if core_parallel is not None:
            try:
                # Explicit cross-TensorCore split of the shard axis (v7x).
                partials = _call(core_parallel, arbitrary)
            except Exception:
                partials = _call("parallel", "arbitrary")
        else:
            partials = _call("parallel", "arbitrary")
    else:
        partials = _call("arbitrary", "arbitrary")

    # Tiny finalize epilogue in JAX (combines per-core partials).
    sums = partials.sum(axis=0)          # (3, C)
    tp = sums[0]
    precision = tp / (sums[1] + 1e-8)
    recall = tp / (sums[2] + 1e-8)
    f1 = 2.0 * (precision * recall / (precision + recall + 1e-8))
    return 1.0 - jnp.mean(f1)


def _f1_loss_ref(predict, target):
    p = jax.nn.sigmoid(predict.astype(jnp.float32))
    t = target.astype(jnp.float32)
    p = jnp.maximum(p * (1.0 - t), 0.01) + p * t
    tp = (p * t).sum(axis=0)
    precision = tp / (p.sum(axis=0) + 1e-8)
    recall = tp / (t.sum(axis=0) + 1e-8)
    f1 = 2.0 * (precision * recall / (precision + recall + 1e-8))
    return 1.0 - f1.mean()


if __name__ == "__main__":
    key = jax.random.PRNGKey(0)

    # (N, C, target_dtype): 2nd exercises ragged-N masking + narrow target,
    # 3rd exercises multi-step reduction (and the 2-shard split on 2-TC chips).
    configs = [
        (16, 128, jnp.float32),
        (13, 256, jnp.bfloat16),
        (2600, 128, jnp.float32),
    ]

    ok = True
    for idx, (n, c, tdtype) in enumerate(configs):
        k1, k2 = jax.random.split(jax.random.fold_in(key, idx))
        predict = jax.random.normal(k1, (n, c), dtype=jnp.float32)
        target = (jax.random.uniform(k2, (n, c)) > 0.7).astype(tdtype)

        loss = jax.block_until_ready(f1_loss(predict, target))
        ref = jax.block_until_ready(_f1_loss_ref(predict, target))
        if not jnp.allclose(loss, ref, atol=1e-4, rtol=1e-4):
            ok = False
            print("MISMATCH", (n, c), float(loss), float(ref))

    if ok:
        print("KERNEL_OK")
</pallas_src>

<mosaic_0001>
module attributes {stable_mosaic.version = 11 : i64} {
  func.func @_f1_partial_kernel(%arg0: i32, %arg1: i32, %arg2: memref<16x128xf32, #tpu.memory_space<vmem>>, %arg3: memref<16x128xf32, #tpu.memory_space<vmem>>, %arg4: memref<1x3x128xf32, #tpu.memory_space<vmem>>, %arg5: memref<8x128xf32, #tpu.memory_space<vmem>>, %arg6: memref<8x128xf32, #tpu.memory_space<vmem>>, %arg7: memref<8x128xf32, #tpu.memory_space<vmem>>) attributes {dimension_semantics = [#tpu.dimension_semantics<arbitrary>, #tpu.dimension_semantics<arbitrary>], iteration_bounds = array<i64: 1, 1>, scalar_prefetch = 0 : i64, scratch_operands = 3 : i64, tpu.core_type = #tpu.core_type<tc>, window_params = [{transform_indices = @transform_0, window_bounds = array<i64: 16, 128>}, {transform_indices = @transform_1, window_bounds = array<i64: 16, 128>}, {transform_indices = @transform_2, window_bounds = array<i64: 1, 3, 128>}]} {
    %c0_i32 = arith.constant 0 : i32
    %0 = arith.cmpi eq, %arg1, %c0_i32 : i32
    %1 = arith.extui %0 : i1 to i32
    %c0_i32_0 = arith.constant 0 : i32
    %2 = arith.cmpi ne, %1, %c0_i32_0 : i32
    scf.if %2 {
      %cst_24 = arith.constant 0.000000e+00 : f32
      %36 = vector.broadcast %cst_24 : f32 to vector<8x128xf32>
      %c0_25 = arith.constant 0 : index
      %c0_26 = arith.constant 0 : index
      %37 = vector.load %arg5[%c0_25, %c0_26] : memref<8x128xf32, #tpu.memory_space<vmem>>, vector<8x128xf32>
      tpu.vector_store %arg5[%c0_25, %c0_26], %36 {strides = array<i32>} : memref<8x128xf32, #tpu.memory_space<vmem>>, vector<8x128xf32>,
      %cst_27 = arith.constant 0.000000e+00 : f32
      %38 = vector.broadcast %cst_27 : f32 to vector<8x128xf32>
      %c0_28 = arith.constant 0 : index
      %c0_29 = arith.constant 0 : index
      %39 = vector.load %arg6[%c0_28, %c0_29] : memref<8x128xf32, #tpu.memory_space<vmem>>, vector<8x128xf32>
      tpu.vector_store %arg6[%c0_28, %c0_29], %38 {strides = array<i32>} : memref<8x128xf32, #tpu.memory_space<vmem>>, vector<8x128xf32>,
      %cst_30 = arith.constant 0.000000e+00 : f32
      %40 = vector.broadcast %cst_30 : f32 to vector<8x128xf32>
      %c0_31 = arith.constant 0 : index
      %c0_32 = arith.constant 0 : index
      %41 = vector.load %arg7[%c0_31, %c0_32] : memref<8x128xf32, #tpu.memory_space<vmem>>, vector<8x128xf32>
      tpu.vector_store %arg7[%c0_31, %c0_32], %40 {strides = array<i32>} : memref<8x128xf32, #tpu.memory_space<vmem>>, vector<8x128xf32>,
    } else {
    }
    %c0 = arith.constant 0 : index
    %c0_1 = arith.constant 0 : index
    %3 = vector.load %arg2[%c0, %c0_1] : memref<16x128xf32, #tpu.memory_space<vmem>>, vector<16x128xf32>
    %c0_2 = arith.constant 0 : index
    %c0_3 = arith.constant 0 : index
    %4 = vector.load %arg3[%c0_2, %c0_3] : memref<16x128xf32, #tpu.memory_space<vmem>>, vector<16x128xf32>
    %cst = arith.constant 0.000000e+00 : f32
    %5 = vector.broadcast %cst : f32 to vector<16x128xf32>
    %6 = arith.subf %5, %3 : vector<16x128xf32>
    %7 = math.exp %6 : vector<16x128xf32>
    %cst_4 = arith.constant 1.000000e+00 : f32
    %8 = vector.broadcast %cst_4 : f32 to vector<16x128xf32>
    %9 = arith.addf %8, %7 : vector<16x128xf32>
    %cst_5 = arith.constant 1.000000e+00 : f32
    %10 = vector.broadcast %cst_5 : f32 to vector<16x128xf32>
    %11 = arith.divf %10, %9 : vector<16x128xf32>
    %12 = arith.mulf %11, %4 : vector<16x128xf32>
    %13 = arith.subf %11, %12 : vector<16x128xf32>
    %cst_6 = arith.constant 0.00999999977 : f32
    %14 = vector.broadcast %cst_6 : f32 to vector<16x128xf32>
    %15 = arith.maximumf %13, %14 : vector<16x128xf32>
    %16 = arith.addf %15, %12 : vector<16x128xf32>
    %17 = arith.mulf %16, %4 : vector<16x128xf32>
    %c0_7 = arith.constant 0 : index
    %c0_8 = arith.constant 0 : index
    %18 = vector.load %arg5[%c0_7, %c0_8] : memref<8x128xf32, #tpu.memory_space<vmem>>, vector<8x128xf32>
    %19 = vector.shape_cast %17 : vector<16x128xf32> to vector<2x8x128xf32>
    %cst_9 = arith.constant dense<0.000000e+00> : vector<8x128xf32>
    %20 = vector.multi_reduction <add>, %19, %cst_9 [0] : vector<2x8x128xf32> to vector<8x128xf32>
    %21 = arith.addf %18, %20 : vector<8x128xf32>
    %c0_10 = arith.constant 0 : index
    %c0_11 = arith.constant 0 : index
    %22 = vector.load %arg5[%c0_10, %c0_11] : memref<8x128xf32, #tpu.memory_space<vmem>>, vector<8x128xf32>
    tpu.vector_store %arg5[%c0_10, %c0_11], %21 {strides = array<i32>} : memref<8x128xf32, #tpu.memory_space<vmem>>, vector<8x128xf32>,
    %c0_12 = arith.constant 0 : index
    %c0_13 = arith.constant 0 : index
    %23 = vector.load %arg6[%c0_12, %c0_13] : memref<8x128xf32, #tpu.memory_space<vmem>>, vector<8x128xf32>
    %24 = vector.shape_cast %16 : vector<16x128xf32> to vector<2x8x128xf32>
    %cst_14 = arith.constant dense<0.000000e+00> : vector<8x128xf32>
    %25 = vector.multi_reduction <add>, %24, %cst_14 [0] : vector<2x8x128xf32> to vector<8x128xf32>
    %26 = arith.addf %23, %25 : vector<8x128xf32>
    %c0_15 = arith.constant 0 : index
    %c0_16 = arith.constant 0 : index
    %27 = vector.load %arg6[%c0_15, %c0_16] : memref<8x128xf32, #tpu.memory_space<vmem>>, vector<8x128xf32>
    tpu.vector_store %arg6[%c0_15, %c0_16], %26 {strides = array<i32>} : memref<8x128xf32, #tpu.memory_space<vmem>>, vector<8x128xf32>,
    %c0_17 = arith.constant 0 : index
    %c0_18 = arith.constant 0 : index
    %28 = vector.load %arg7[%c0_17, %c0_18] : memref<8x128xf32, #tpu.memory_space<vmem>>, vector<8x128xf32>
    %29 = vector.shape_cast %4 : vector<16x128xf32> to vector<2x8x128xf32>
    %cst_19 = arith.constant dense<0.000000e+00> : vector<8x128xf32>
    %30 = vector.multi_reduction <add>, %29, %cst_19 [0] : vector<2x8x128xf32> to vector<8x128xf32>
    %31 = arith.addf %28, %30 : vector<8x128xf32>
    %c0_20 = arith.constant 0 : index
    %c0_21 = arith.constant 0 : index
    %32 = vector.load %arg7[%c0_20, %c0_21] : memref<8x128xf32, #tpu.memory_space<vmem>>, vector<8x128xf32>
    tpu.vector_store %arg7[%c0_20, %c0_21], %31 {strides = array<i32>} : memref<8x128xf32, #tpu.memory_space<vmem>>, vector<8x128xf32>,
    %c0_i32_22 = arith.constant 0 : i32
    %33 = arith.cmpi eq, %arg1, %c0_i32_22 : i32
    %34 = arith.extui %33 : i1 to i32
    %c0_i32_23 = arith.constant 0 : i32
    %35 = arith.cmpi ne, %34, %c0_i32_23 : i32
    scf.if %35 {
      %c0_24 = arith.constant 0 : index
      %c0_25 = arith.constant 0 : index
      %36 = vector.load %arg5[%c0_24, %c0_25] : memref<8x128xf32, #tpu.memory_space<vmem>>, vector<8x128xf32>
      %cst_26 = arith.constant dense<0.000000e+00> : vector<128xf32>
      %37 = vector.multi_reduction <add>, %36, %cst_26 [0] : vector<8x128xf32> to vector<128xf32>
      %38 = vector.shape_cast %37 : vector<128xf32> to vector<1x128xf32>
      %c0_27 = arith.constant 0 : index
      %c0_28 = arith.constant 0 : index
      %c0_29 = arith.constant 0 : index
      %39 = vector.load %arg4[%c0_27, %c0_28, %c0_29] : memref<1x3x128xf32, #tpu.memory_space<vmem>>, vector<1x1x128xf32>
      %40 = vector.shape_cast %39 : vector<1x1x128xf32> to vector<1x128xf32>
      %41 = vector.shape_cast %38 : vector<1x128xf32> to vector<1x1x128xf32>
      tpu.vector_store %arg4[%c0_27, %c0_28, %c0_29], %41 {strides = array<i32>} : memref<1x3x128xf32, #tpu.memory_space<vmem>>, vector<1x1x128xf32>,
      %c0_30 = arith.constant 0 : index
      %c0_31 = arith.constant 0 : index
      %42 = vector.load %arg6[%c0_30, %c0_31] : memref<8x128xf32, #tpu.memory_space<vmem>>, vector<8x128xf32>
      %cst_32 = arith.constant dense<0.000000e+00> : vector<128xf32>
      %43 = vector.multi_reduction <add>, %42, %cst_32 [0] : vector<8x128xf32> to vector<128xf32>
      %44 = vector.shape_cast %43 : vector<128xf32> to vector<1x128xf32>
      %c0_33 = arith.constant 0 : index
      %c1 = arith.constant 1 : index
      %c0_34 = arith.constant 0 : index
      %45 = vector.load %arg4[%c0_33, %c1, %c0_34] : memref<1x3x128xf32, #tpu.memory_space<vmem>>, vector<1x1x128xf32>
      %46 = vector.shape_cast %45 : vector<1x1x128xf32> to vector<1x128xf32>
      %47 = vector.shape_cast %44 : vector<1x128xf32> to vector<1x1x128xf32>
      tpu.vector_store %arg4[%c0_33, %c1, %c0_34], %47 {strides = array<i32>} : memref<1x3x128xf32, #tpu.memory_space<vmem>>, vector<1x1x128xf32>,
      %c0_35 = arith.constant 0 : index
      %c0_36 = arith.constant 0 : index
      %48 = vector.load %arg7[%c0_35, %c0_36] : memref<8x128xf32, #tpu.memory_space<vmem>>, vector<8x128xf32>
      %cst_37 = arith.constant dense<0.000000e+00> : vector<128xf32>
      %49 = vector.multi_reduction <add>, %48, %cst_37 [0] : vector<8x128xf32> to vector<128xf32>
      %50 = vector.shape_cast %49 : vector<128xf32> to vector<1x128xf32>
      %c0_38 = arith.constant 0 : index
      %c2 = arith.constant 2 : index
      %c0_39 = arith.constant 0 : index
      %51 = vector.load %arg4[%c0_38, %c2, %c0_39] : memref<1x3x128xf32, #tpu.memory_space<vmem>>, vector<1x1x128xf32>
      %52 = vector.shape_cast %51 : vector<1x1x128xf32> to vector<1x128xf32>
      %53 = vector.shape_cast %50 : vector<1x128xf32> to vector<1x1x128xf32>
      tpu.vector_store %arg4[%c0_38, %c2, %c0_39], %53 {strides = array<i32>} : memref<1x3x128xf32, #tpu.memory_space<vmem>>, vector<1x1x128xf32>,
    } else {
    }
    return
  }
  func.func @transform_0(%arg0: i32, %arg1: i32) -> (i32, i32) {
    %c1_i32 = arith.constant 1 : i32
    %0 = arith.muli %arg0, %c1_i32 : i32
    %1 = arith.addi %0, %arg1 : i32
    %c0_i32 = arith.constant 0 : i32
    %c0_i32_0 = arith.constant 0 : i32
    return %1, %c0_i32 : i32, i32
  }
  func.func @transform_1(%arg0: i32, %arg1: i32) -> (i32, i32) {
    %c1_i32 = arith.constant 1 : i32
    %0 = arith.muli %arg0, %c1_i32 : i32
    %1 = arith.addi %0, %arg1 : i32
    %c0_i32 = arith.constant 0 : i32
    %c0_i32_0 = arith.constant 0 : i32
    return %1, %c0_i32 : i32, i32
  }
  func.func @transform_2(%arg0: i32, %arg1: i32) -> (i32, i32, i32) {
    %c0_i32 = arith.constant 0 : i32
    %c0_i32_0 = arith.constant 0 : i32
    %c0_i32_1 = arith.constant 0 : i32
    return %arg0, %c0_i32, %c0_i32_0 : i32, i32, i32
  }
}

</mosaic_0001>

<llo_original>
// kernel: tpu_custom_call.1
$region0: #{tpu_custom_call.1}
  #allocation0 [shape = 'u32[]', space=smem, size = 0x4, offset = 0x4, fixed_abs, tag = 'smem constant byte address 0x4 - core index']
  #allocation1 [shape = 'u32[144,128]{1,0:T(1,128)}', space=vmem, size = 0x12000, scoped, tag = 'internal scratch']
  #allocation2 [shape = 'f32[8,128]{1,0:T(8,128)}', space=vmem, size = 0x1000, scoped, tag = 'scratch operand']
  #allocation3 [shape = 'f32[8,128]{1,0:T(8,128)}', space=vmem, size = 0x1000, scoped, tag = 'scratch operand']
  #allocation4 [shape = 'f32[8,128]{1,0:T(8,128)}', space=vmem, size = 0x1000, scoped, tag = 'scratch operand']
  %s0 = inlined_call_operand.hbm [shape: f32[16,128], index: 0, kind: input, shape index: {}]
  %s1 = inlined_call_operand.hbm [shape: f32[16,128], index: 1, kind: input, shape index: {}]
  %s2 = inlined_call_operand.vmem [shape: f32[1,3,128], index: 2, kind: output, shape index: {}]
  %s3 = sld [smem:[#allocation0]]
  $region34: #{tpu_custom_call.1} parent=0
    _
  %s5 = ssub.s32 1, %s3
  %s6 = scalar_select 0, %s5, %s3
  $region1: #{tpu_custom_call.1} parent=0
    #allocation5 [shape = 'u8[8192]{0}', space=vmem, size = 0x2000, scoped, tag = 'input window, operand 0, single buffered']
    #allocation6 [shape = 's32[1]{0}', space=sflag, size = 0x4, scoped, tag = 'scoped memory for tpu_custom_call.1']
    #allocation7 [shape = 'u8[8192]{0}', space=vmem, size = 0x2000, scoped, tag = 'input window, operand 1, single buffered']
    #allocation8 [shape = 's32[1]{0}', space=sflag, size = 0x4, scoped, tag = 'scoped memory for tpu_custom_call.1']
    %7 = vsyncpa [#allocation6], 0
    %8 = vsyncpa [#allocation8], 0
    // Predicated region
    $region2: #{tpu_custom_call.1} parent=1 // pred_check
      _
    $region3: #{tpu_custom_call.1} parent=1 // pred_check_branch
      %10 = sbr.rel (0) target = $region5
    $region4: #{tpu_custom_call.1} parent=1 // pred_region
      %s11 = sadd.s32 0, 0
      %s12 = smul.u32 2, %s11
      %s14 = ssub.s32 256, 256
      %15 = vsyncadd [#allocation6], %s14
      %s16 = smul.addr %s12, 128
      %s17 = scalar_lea.hbm %s0, %s16
      %s18 = sshll.u32 [#allocation5], 4
      %s19 = int_to_ptr.vmem [resolvable:$true] %s18
      %24 = dma.hbm_to_vmem [thread:$0]  %s17, 256, %s19, [#allocation6], 128, 128, 8
    $region5: #{tpu_custom_call.1} parent=1 // pred_fallthru
      _
    // Predicated region
    $region6: #{tpu_custom_call.1} parent=1 // pred_check
      _
    $region7: #{tpu_custom_call.1} parent=1 // pred_check_branch
      %26 = sbr.rel (0) target = $region9
    $region8: #{tpu_custom_call.1} parent=1 // pred_region
      %s27 = sadd.s32 0, 0
      %s28 = smul.u32 2, %s27
      %s30 = ssub.s32 256, 256
      %31 = vsyncadd [#allocation8], %s30
      %s32 = smul.addr %s28, 128
      %s33 = scalar_lea.hbm %s1, %s32
      %s34 = sshll.u32 [#allocation7], 4
      %s35 = int_to_ptr.vmem [resolvable:$true] %s34
      %40 = dma.hbm_to_vmem [thread:$0]  %s33, 256, %s35, [#allocation8], 128, 128, 8
    $region9: #{tpu_custom_call.1} parent=1 // pred_fallthru
      _
    // Predicated region
    $region10: #{tpu_custom_call.1} parent=1 // pred_check
      _
    $region11: #{tpu_custom_call.1} parent=1 // pred_check_branch
      %42 = sbr.rel (0) target = $region13
    $region12: #{tpu_custom_call.1} parent=1 // pred_region
      %43 = dma.done [#allocation6], 256
    $region13: #{tpu_custom_call.1} parent=1 // pred_fallthru
      _
    // Predicated region
    $region14: #{tpu_custom_call.1} parent=1 // pred_check
      _
    $region15: #{tpu_custom_call.1} parent=1 // pred_check_branch
      %45 = sbr.rel (0) target = $region17
    $region16: #{tpu_custom_call.1} parent=1 // pred_region
      %46 = dma.done [#allocation8], 256
    $region17: #{tpu_custom_call.1} parent=1 // pred_fallthru
      _
    %s47 = sadd.s32 0, 0
    %s48 = smul.u32 2, %s47
    %s49 = sadd.s32 0, 0
    %s50 = smul.u32 2, %s49
    %p51 = scmp.eq.s32.totalorder 0, 0
    // Predicated region
    $region18: #{tpu_custom_call.1} parent=1 // pred_check
      %p52 = pneg %p51
    $region19: #{tpu_custom_call.1} parent=1 // pred_check_branch
      %54 = sbr.rel (%p52) target = $region21
    $region20: #{tpu_custom_call.1} parent=1 // pred_region
      %55 = vst [vmem:[#allocation2] sm:$0xff] 0.0
      %56 = vst [vmem:[#allocation3] sm:$0xff] 0.0
      %57 = vst [vmem:[#allocation4] sm:$0xff] 0.0
    $region21: #{tpu_custom_call.1} parent=1 // pred_fallthru
      _
    %v58 = vld [vmem:[#allocation5] sm:$0xff]
    %v59 = vld [vmem:[#allocation5 + $0x8] sm:$0xff]
    %v60 = vld [vmem:[#allocation7] sm:$0xff]
    %v61 = vld [vmem:[#allocation7 + $0x8] sm:$0xff]
    %v62 = vsub.f32 0.0, %v58
    %v63 = vsub.f32 0.0, %v59
    %v64 = vmul.f32 %v62, 1.442695
    %v65 = vpow.pop %v64
    %v66 = vmul.f32 %v63, 1.442695
    %v67 = vpow.pop %v66
    %v68 = vadd.f32 %v65, 1.0
    %v69 = vadd.f32 %v67, 1.0
    %v70 = vrcp.pop %v68
    %v71 = vmul.f32 1.0, %v70
    %v72 = vrcp.pop %v69
    %v73 = vmul.f32 1.0, %v72
    %v74 = vmul.f32 %v71, %v60
    %v75 = vmul.f32 %v73, %v61
    %v76 = vsub.f32 %v71, %v74
    %v77 = vsub.f32 %v73, %v75
    %v78 = vmax.f32 %v76, 0.01
    %v79 = vmax.f32 %v77, 0.01
    %v80 = vadd.f32 %v78, %v74
    %v81 = vadd.f32 %v79, %v75
    %v82 = vmul.f32 %v80, %v60
    %v83 = vmul.f32 %v81, %v61
    %v84 = vld [vmem:[#allocation2] sm:$0xff]
    %v85 = vadd.f32 %v82, %v83
    %v86 = vadd.f32 %v84, %v85
    %87 = vst [vmem:[#allocation2] sm:$0xff] %v86
    %v88 = vld [vmem:[#allocation3] sm:$0xff]
    %v89 = vadd.f32 %v80, %v81
    %v90 = vadd.f32 %v88, %v89
    %91 = vst [vmem:[#allocation3] sm:$0xff] %v90
    %v92 = vld [vmem:[#allocation4] sm:$0xff]
    %v93 = vadd.f32 %v60, %v61
    %v94 = vadd.f32 %v92, %v93
    %95 = vst [vmem:[#allocation4] sm:$0xff] %v94
    // Predicated region
    $region22: #{tpu_custom_call.1} parent=1 // pred_check
      %p96 = pneg %p51
    $region23: #{tpu_custom_call.1} parent=1 // pred_check_branch
      %98 = sbr.rel (%p96) target = $region25
    $region24: #{tpu_custom_call.1} parent=1 // pred_region
      %v99 = vld [vmem:[#allocation2] sm:$0xff]
      %v100 = vrot.slane %v99, 4
      %v101 = vadd.f32 %v99, %v100
      %v102 = vrot.slane %v101, 2
      %v103 = vadd.f32 %v101, %v102
      %v104 = vrot.slane %v103, 1
      %v105 = vadd.f32 %v103, %v104
      %106 = vst [vmem:[%s2] sm:$0x1] %v105
      %v107 = vld [vmem:[#allocation3] sm:$0xff]
      %v108 = vrot.slane %v107, 4
      %v109 = vadd.f32 %v107, %v108
      %v110 = vrot.slane %v109, 2
      %v111 = vadd.f32 %v109, %v110
      %v112 = vrot.slane %v111, 1
      %v113 = vadd.f32 %v111, %v112
      %114 = vst [vmem:[%s2 + $0x1] sm:$0x1] %v113
      %v115 = vld [vmem:[#allocation4] sm:$0xff]
      %v116 = vrot.slane %v115, 4
      %v117 = vadd.f32 %v115, %v116
      %v118 = vrot.slane %v117, 2
      %v119 = vadd.f32 %v117, %v118
      %v120 = vrot.slane %v119, 1
      %v121 = vadd.f32 %v119, %v120
      %122 = vst [vmem:[%s2 + $0x2] sm:$0x1] %v121
    $region25: #{tpu_custom_call.1} parent=1 // pred_fallthru
      _
    // Predicated region
    $region26: #{tpu_custom_call.1} parent=1 // pred_check
      _
    $region27: #{tpu_custom_call.1} parent=1 // pred_check_branch
      %124 = sbr.rel (0) target = $region29
    $region28: #{tpu_custom_call.1} parent=1 // pred_region
      _
    $region29: #{tpu_custom_call.1} parent=1 // pred_fallthru
      _
    // Predicated region
    $region30: #{tpu_custom_call.1} parent=1 // pred_check
      _
    $region31: #{tpu_custom_call.1} parent=1 // pred_check_branch
      %126 = sbr.rel (0) target = $region33
    $region32: #{tpu_custom_call.1} parent=1 // pred_region
      _
    $region33: #{tpu_custom_call.1} parent=1 // pred_fallthru
      _
    %127 = vsyncpa [#allocation6], 1
    %128 = vsyncpa [#allocation8], 1

</llo_original>
